<compile_context>
chip_gen: v7x
topology: tpu7x:2x2x1
jax: 0.10.0
libtpu: 0.0.40
codegen_flags: <defaults>
</compile_context>

<pallas_src>
import functools

import jax
import jax.numpy as jnp
from jax import lax
from jax.experimental import pallas as pl
from jax.experimental.pallas import tpu as pltpu


def _pooling_kernel(x_ref, o_ref, *, pool_size):
    # x_ref / o_ref block: (TB, H, W) -- TB fused (n, c) planes per grid step.
    pad = pool_size // 2
    x = x_ref[...].astype(jnp.float32)
    _, H, W = x.shape
    # TODO(synk): optionally keep bf16 tap sums on v6e/v7x to halve temporary
    # footprint (minor numerics change); f32 kept here for exactness.

    # Row / column index planes shared by the border masks and the
    # count_include_pad=False divisor (broadcast along TB is free).
    row = lax.broadcasted_iota(jnp.int32, (1, H, W), 1)
    col = lax.broadcasted_iota(jnp.int32, (1, H, W), 2)

    # Vertical pass (H = sublane dim): zero-padded window sum via XLU sublane
    # rotations; wrapped rows are masked off at the image borders.
    vsum = x
    for d in range(1, pad + 1):                          # static unroll
        vsum = vsum + jnp.where(row >= d, pltpu.roll(x, d, axis=1), 0.0)
        vsum = vsum + jnp.where(row < H - d,
                                pltpu.roll(x, H - d, axis=1), 0.0)

    # Horizontal pass (W = lane dim): XLU lane rotations on the vertical
    # sums; wrapped columns masked off at the image borders.
    hsum = vsum
    for d in range(1, pad + 1):                          # static unroll
        hsum = hsum + jnp.where(col >= d, pltpu.roll(vsum, d, axis=2), 0.0)
        hsum = hsum + jnp.where(col < W - d,
                                pltpu.roll(vsum, W - d, axis=2), 0.0)

    # Exact reciprocal of the separable valid-tap count: only H*W divides per
    # grid step, shared across the TB planes in the block.
    cnt_r = jnp.minimum(row + pad, H - 1) - jnp.maximum(row - pad, 0) + 1
    cnt_c = jnp.minimum(col + pad, W - 1) - jnp.maximum(col - pad, 0) + 1
    inv = 1.0 / (cnt_r * cnt_c).astype(jnp.float32)      # (1, H, W)

    o_ref[...] = (hsum * inv - x).astype(o_ref.dtype)


def _block_planes(M, plane_bytes, target_bytes=1 << 20):
    """Largest divisor of M whose block stays <= target and leaves >=2 steps."""
    cap = max(1, target_bytes // max(plane_bytes, 1))
    if M >= 2:
        cap = min(cap, M // 2)      # >= 2 grid steps -> both TCs busy (v7x)
    cap = max(1, min(cap, M))
    best = 1
    for d in range(1, cap + 1):
        if M % d == 0:
            best = d
    return best


def pooling(x, pool_size=3):
    """PoolFormer token mixer: avg_pool(x) - x. Input/output NCHW."""
    if pool_size == 1:
        return jnp.zeros_like(x)
    # TODO(synk): even pool_size has asymmetric PyTorch window semantics;
    # only the odd case (PoolFormer default 3) is implemented.
    assert pool_size % 2 == 1, "only odd pool_size supported"

    N, C, H, W = x.shape
    M = N * C
    x2 = x.reshape(M, H, W)                   # free: merges leading dims

    tb = _block_planes(M, H * W * x.dtype.itemsize)
    kernel = functools.partial(_pooling_kernel, pool_size=pool_size)
    out2 = pl.pallas_call(
        kernel,
        out_shape=jax.ShapeDtypeStruct((M, H, W), x.dtype),
        grid=(M // tb,),
        in_specs=[pl.BlockSpec((tb, H, W), lambda i: (i, 0, 0))],
        out_specs=pl.BlockSpec((tb, H, W), lambda i: (i, 0, 0)),
        compiler_params=pltpu.CompilerParams(
            dimension_semantics=("parallel",),
            vmem_limit_bytes=40 * 1024 * 1024),
    )(x2)
    # TODO(synk): for very large planes (>~1k x 1k) tile H with a pad-row
    # halo; for tiny planes (7x7) fold rows into lanes for denser vregs.
    return out2.reshape(N, C, H, W)


def _reference(x, pool_size=3):
    # Pure-JAX reference: AvgPool2d(stride=1, pad=pool//2,
    # count_include_pad=False) minus identity, on NCHW.
    pad = pool_size // 2
    xf = x.astype(jnp.float32)
    win = (1, 1, pool_size, pool_size)
    strides = (1, 1, 1, 1)
    padding = ((0, 0), (0, 0), (pad, pad), (pad, pad))
    summed = lax.reduce_window(xf, 0.0, lax.add, win, strides, padding)
    counts = lax.reduce_window(jnp.ones_like(xf), 0.0, lax.add, win, strides,
                               padding)
    return (summed / counts - xf).astype(x.dtype)


if __name__ == "__main__":
    key = jax.random.PRNGKey(0)
    x = jax.random.normal(key, (2, 4, 16, 16), dtype=jnp.float32)

    out = pooling(x, pool_size=3)
    out = jax.block_until_ready(out)

    ref = _reference(x, pool_size=3)
    assert out.shape == x.shape and out.dtype == x.dtype
    assert jnp.max(jnp.abs(out - ref)) < 1e-5

    print("KERNEL_OK")
</pallas_src>

<mosaic_0001>
module attributes {stable_mosaic.version = 11 : i64} {
  func.func @_pooling_kernel(%arg0: i32, %arg1: memref<4x16x16xf32, #tpu.memory_space<vmem>>, %arg2: memref<4x16x16xf32, #tpu.memory_space<vmem>>) attributes {dimension_semantics = [#tpu.dimension_semantics<parallel>], iteration_bounds = array<i64: 2>, scalar_prefetch = 0 : i64, scratch_operands = 0 : i64, tpu.core_type = #tpu.core_type<tc>, window_params = [{transform_indices = @transform_0, window_bounds = array<i64: 4, 16, 16>}, {transform_indices = @transform_1, window_bounds = array<i64: 4, 16, 16>}]} {
    %c0 = arith.constant 0 : index
    %c0_0 = arith.constant 0 : index
    %c0_1 = arith.constant 0 : index
    %0 = vector.load %arg1[%c0, %c0_0, %c0_1] : memref<4x16x16xf32, #tpu.memory_space<vmem>>, vector<4x16x16xf32>
    %1 = tpu.iota {dimensions = array<i32: 1>} : vector<1x16x16xi32>
    %2 = tpu.iota {dimensions = array<i32: 2>} : vector<1x16x16xi32>
    %c1_i32 = arith.constant 1 : i32
    %3 = vector.broadcast %c1_i32 : i32 to vector<1x16x16xi32>
    %4 = arith.cmpi sge, %1, %3 : vector<1x16x16xi32>
    %c1_i32_2 = arith.constant 1 : i32
    %5 = tpu.dynamic_rotate %0 by %c1_i32_2 dim 1 : vector<4x16x16xf32>, i32 -> vector<4x16x16xf32>
    %cst = arith.constant 0.000000e+00 : f32
    %6 = vector.shape_cast %4 : vector<1x16x16xi1> to vector<1x16x16xi1>
    %7 = vector.broadcast %6 : vector<1x16x16xi1> to vector<4x16x16xi1>
    %8 = vector.broadcast %cst : f32 to vector<4x16x16xf32>
    %9 = arith.select %7, %5, %8 : vector<4x16x16xi1>, vector<4x16x16xf32>
    %10 = arith.addf %0, %9 : vector<4x16x16xf32>
    %c15_i32 = arith.constant 15 : i32
    %11 = vector.broadcast %c15_i32 : i32 to vector<1x16x16xi32>
    %12 = arith.cmpi slt, %1, %11 : vector<1x16x16xi32>
    %c15_i32_3 = arith.constant 15 : i32
    %13 = tpu.dynamic_rotate %0 by %c15_i32_3 dim 1 : vector<4x16x16xf32>, i32 -> vector<4x16x16xf32>
    %cst_4 = arith.constant 0.000000e+00 : f32
    %14 = vector.shape_cast %12 : vector<1x16x16xi1> to vector<1x16x16xi1>
    %15 = vector.broadcast %14 : vector<1x16x16xi1> to vector<4x16x16xi1>
    %16 = vector.broadcast %cst_4 : f32 to vector<4x16x16xf32>
    %17 = arith.select %15, %13, %16 : vector<4x16x16xi1>, vector<4x16x16xf32>
    %18 = arith.addf %10, %17 : vector<4x16x16xf32>
    %c1_i32_5 = arith.constant 1 : i32
    %19 = vector.broadcast %c1_i32_5 : i32 to vector<1x16x16xi32>
    %20 = arith.cmpi sge, %2, %19 : vector<1x16x16xi32>
    %c1_i32_6 = arith.constant 1 : i32
    %21 = tpu.dynamic_rotate %18 by %c1_i32_6 dim 2 : vector<4x16x16xf32>, i32 -> vector<4x16x16xf32>
    %cst_7 = arith.constant 0.000000e+00 : f32
    %22 = vector.shape_cast %20 : vector<1x16x16xi1> to vector<1x16x16xi1>
    %23 = vector.broadcast %22 : vector<1x16x16xi1> to vector<4x16x16xi1>
    %24 = vector.broadcast %cst_7 : f32 to vector<4x16x16xf32>
    %25 = arith.select %23, %21, %24 : vector<4x16x16xi1>, vector<4x16x16xf32>
    %26 = arith.addf %18, %25 : vector<4x16x16xf32>
    %c15_i32_8 = arith.constant 15 : i32
    %27 = vector.broadcast %c15_i32_8 : i32 to vector<1x16x16xi32>
    %28 = arith.cmpi slt, %2, %27 : vector<1x16x16xi32>
    %c15_i32_9 = arith.constant 15 : i32
    %29 = tpu.dynamic_rotate %18 by %c15_i32_9 dim 2 : vector<4x16x16xf32>, i32 -> vector<4x16x16xf32>
    %cst_10 = arith.constant 0.000000e+00 : f32
    %30 = vector.shape_cast %28 : vector<1x16x16xi1> to vector<1x16x16xi1>
    %31 = vector.broadcast %30 : vector<1x16x16xi1> to vector<4x16x16xi1>
    %32 = vector.broadcast %cst_10 : f32 to vector<4x16x16xf32>
    %33 = arith.select %31, %29, %32 : vector<4x16x16xi1>, vector<4x16x16xf32>
    %34 = arith.addf %26, %33 : vector<4x16x16xf32>
    %c1_i32_11 = arith.constant 1 : i32
    %35 = vector.broadcast %c1_i32_11 : i32 to vector<1x16x16xi32>
    %36 = arith.addi %1, %35 : vector<1x16x16xi32>
    %c15_i32_12 = arith.constant 15 : i32
    %37 = vector.broadcast %c15_i32_12 : i32 to vector<1x16x16xi32>
    %38 = arith.minsi %36, %37 : vector<1x16x16xi32>
    %c1_i32_13 = arith.constant 1 : i32
    %39 = vector.broadcast %c1_i32_13 : i32 to vector<1x16x16xi32>
    %40 = arith.subi %1, %39 : vector<1x16x16xi32>
    %c0_i32 = arith.constant 0 : i32
    %41 = vector.broadcast %c0_i32 : i32 to vector<1x16x16xi32>
    %42 = arith.maxsi %40, %41 : vector<1x16x16xi32>
    %43 = arith.subi %38, %42 : vector<1x16x16xi32>
    %c1_i32_14 = arith.constant 1 : i32
    %44 = vector.broadcast %c1_i32_14 : i32 to vector<1x16x16xi32>
    %45 = arith.addi %43, %44 : vector<1x16x16xi32>
    %c1_i32_15 = arith.constant 1 : i32
    %46 = vector.broadcast %c1_i32_15 : i32 to vector<1x16x16xi32>
    %47 = arith.addi %2, %46 : vector<1x16x16xi32>
    %c15_i32_16 = arith.constant 15 : i32
    %48 = vector.broadcast %c15_i32_16 : i32 to vector<1x16x16xi32>
    %49 = arith.minsi %47, %48 : vector<1x16x16xi32>
    %c1_i32_17 = arith.constant 1 : i32
    %50 = vector.broadcast %c1_i32_17 : i32 to vector<1x16x16xi32>
    %51 = arith.subi %2, %50 : vector<1x16x16xi32>
    %c0_i32_18 = arith.constant 0 : i32
    %52 = vector.broadcast %c0_i32_18 : i32 to vector<1x16x16xi32>
    %53 = arith.maxsi %51, %52 : vector<1x16x16xi32>
    %54 = arith.subi %49, %53 : vector<1x16x16xi32>
    %c1_i32_19 = arith.constant 1 : i32
    %55 = vector.broadcast %c1_i32_19 : i32 to vector<1x16x16xi32>
    %56 = arith.addi %54, %55 : vector<1x16x16xi32>
    %57 = arith.muli %45, %56 : vector<1x16x16xi32>
    %58 = arith.sitofp %57 : vector<1x16x16xi32> to vector<1x16x16xf32>
    %cst_20 = arith.constant 1.000000e+00 : f32
    %59 = vector.broadcast %cst_20 : f32 to vector<1x16x16xf32>
    %60 = arith.divf %59, %58 : vector<1x16x16xf32>
    %61 = vector.broadcast %60 : vector<1x16x16xf32> to vector<4x16x16xf32>
    %62 = arith.mulf %34, %61 : vector<4x16x16xf32>
    %63 = arith.subf %62, %0 : vector<4x16x16xf32>
    %c0_21 = arith.constant 0 : index
    %c0_22 = arith.constant 0 : index
    %c0_23 = arith.constant 0 : index
    %64 = vector.load %arg2[%c0_21, %c0_22, %c0_23] : memref<4x16x16xf32, #tpu.memory_space<vmem>>, vector<4x16x16xf32>
    tpu.vector_store %arg2[%c0_21, %c0_22, %c0_23], %63 {strides = array<i32>} : memref<4x16x16xf32, #tpu.memory_space<vmem>>, vector<4x16x16xf32>,
    return
  }
  func.func @transform_0(%arg0: i32) -> (i32, i32, i32) {
    %c0_i32 = arith.constant 0 : i32
    %c0_i32_0 = arith.constant 0 : i32
    %c0_i32_1 = arith.constant 0 : i32
    return %arg0, %c0_i32, %c0_i32_0 : i32, i32, i32
  }
  func.func @transform_1(%arg0: i32) -> (i32, i32, i32) {
    %c0_i32 = arith.constant 0 : i32
    %c0_i32_0 = arith.constant 0 : i32
    %c0_i32_1 = arith.constant 0 : i32
    return %arg0, %c0_i32, %c0_i32_0 : i32, i32, i32
  }
}

</mosaic_0001>

<llo_original>
// kernel: tpu_custom_call.1
$region0: #{tpu_custom_call.1}
  #allocation0 [shape = 'u32[]', space=smem, size = 0x4, offset = 0x4, fixed_abs, tag = 'smem constant byte address 0x4 - core index']
  #allocation1 [shape = 'u32[144,128]{1,0:T(1,128)}', space=vmem, size = 0x12000, scoped, tag = 'internal scratch']
  %s0 = inlined_call_operand.hbm [shape: f32[8,16,16], index: 0, kind: input, shape index: {}]
  %s1 = inlined_call_operand.hbm [shape: f32[8,16,16], index: 1, kind: output, shape index: {}]
  %s2 = sld [smem:[#allocation0]]
  $region41: #{tpu_custom_call.1} parent=0
    _
  %s4 = ssub.s32 1, %s2
  %s5 = scalar_select 0, %s4, %s2
  $region1: #{tpu_custom_call.1} parent=0
    #allocation2 [shape = 'u8[65536]{0}', space=vmem, size = 0x10000, scoped, tag = 'input window, operand 0']
    #allocation3 [shape = 's32[2]{0}', space=sflag, size = 0x8, scoped, tag = 'scoped memory for tpu_custom_call.1']
    #allocation4 [shape = 's32[2]{0}', space=sflag, size = 0x8, scoped, tag = 'scoped memory for tpu_custom_call.1']
    #allocation5 [shape = 'u8[65536]{0}', space=vmem, size = 0x10000, scoped, tag = 'output window, operand 0']
    %6 = vsyncpa [#allocation3], 0
    %s7 = scalar_lea.sflag [#allocation3], 1
    %8 = vsyncpa %s7, 0
    %9 = vsyncpa [#allocation4], 0
    %s10 = scalar_lea.sflag [#allocation4], 1
    %11 = vsyncpa %s10, 0
    loop: start=0, step=1, limit=4
    $region2: #{tpu_custom_call.1} parent=1 // loop_pre_header
      _
    $region3: #{tpu_custom_call.1} parent=1 // loop_header
      %s13 = sphi 0, %s17
      %p14 = scmp.ge.s32.totalorder %s13, 4
      %s23 = sphi 0, %s25
      %s26 = sphi 0, %s23
      %s27 = sphi 0, %s26
      %s43 = sphi 0, %s27
      %s49 = sphi 0, %s51
      %s52 = sphi 0, %s49
      %s53 = sphi 0, %s52
      %s69 = sphi 0, %s53
    $region4: #{tpu_custom_call.1} parent=1 // loop_header_branch
      %16 = sbr.rel (%p14) target = $region8
    $region5: #{tpu_custom_call.1} parent=1 // loop_body
      %s18 = ssub.s32 %s13, 1
      %s19 = ssub.s32 %s13, 2
      %s20 = sadd.s32 %s13, 1
      %s21 = ssub.s32 %s13, %s20
      %p22 = scmp.eq.s32.totalorder %s21, 0
      %s24 = sadd.s32 %s23, 1
      %s25 = scalar_select %p22, %s23, %s24
      %p28 = pneg %p22
      %p29 = scmp.eq.s32.totalorder %s13, 1
      %p30 = por %p28, %p29
      %p31 = scmp.ne.s32.totalorder %s23, %s26
      %p32 = scmp.eq.s32.totalorder %s13, 0
      %p33 = por %p31, %p32
      %p34 = scmp.ne.s32.totalorder %s23, %s26
      %p35 = scmp.eq.s32.totalorder %s18, 1
      %p36 = por %p34, %p35
      %p37 = scmp.ne.s32.totalorder %s26, %s27
      %p38 = scmp.eq.s32.totalorder %s18, 0
      %p39 = por %p37, %p38
      %p40 = scmp.ne.s32.totalorder %s26, %s27
      %p41 = scmp.eq.s32.totalorder %s19, 1
      %p42 = por %p40, %p41
      %p44 = scmp.ne.s32.totalorder %s27, %s43
      %p45 = scmp.eq.s32.totalorder %s19, 0
      %p46 = por %p44, %p45
      %s47 = ssub.s32 %s13, %s20
      %p48 = scmp.eq.s32.totalorder %s47, 0
      %s50 = sadd.s32 %s49, 1
      %s51 = scalar_select %p48, %s49, %s50
      %p54 = pneg %p48
      %p55 = scmp.eq.s32.totalorder %s13, 1
      %p56 = por %p54, %p55
      %p57 = scmp.ne.s32.totalorder %s49, %s52
      %p58 = scmp.eq.s32.totalorder %s13, 0
      %p59 = por %p57, %p58
      %p60 = scmp.ne.s32.totalorder %s49, %s52
      %p61 = scmp.eq.s32.totalorder %s18, 1
      %p62 = por %p60, %p61
      %p63 = scmp.ne.s32.totalorder %s52, %s53
      %p64 = scmp.eq.s32.totalorder %s18, 0
      %p65 = por %p63, %p64
      %p66 = scmp.ne.s32.totalorder %s52, %s53
      %p67 = scmp.eq.s32.totalorder %s19, 1
      %p68 = por %p66, %p67
      %p70 = scmp.ne.s32.totalorder %s53, %s69
      %p71 = scmp.eq.s32.totalorder %s19, 0
      %p72 = por %p70, %p71
      %p73 = scmp.le.s32.totalorder 1, %s13
      %p74 = scmp.lt.s32.totalorder %s13, 3
      %p75 = pnand %p73, %p74
      %p76 = pneg %p75
      // Predicated region
      $region9: #{tpu_custom_call.1} parent=5 // pred_check
        _
      $region10: #{tpu_custom_call.1} parent=5 // pred_check_branch
        %78 = sbr.rel (%p75) target = $region12
      $region11: #{tpu_custom_call.1} parent=5 // pred_region
        %s79 = ssub.s32 %s13, 1
      $region12: #{tpu_custom_call.1} parent=5 // pred_fallthru
        _
      %p80 = scmp.lt.s32.totalorder %s13, 2
      // Predicated region
      $region13: #{tpu_custom_call.1} parent=5 // pred_check
        %p81 = pneg %p80
      $region14: #{tpu_custom_call.1} parent=5 // pred_check_branch
        %83 = sbr.rel (%p81) target = $region16
      $region15: #{tpu_custom_call.1} parent=5 // pred_region
        // Predicated region
        $region17: #{tpu_custom_call.1} parent=15 // pred_check
          %p84 = pneg %p33
        $region18: #{tpu_custom_call.1} parent=15 // pred_check_branch
          %86 = sbr.rel (%p84) target = $region20
        $region19: #{tpu_custom_call.1} parent=15 // pred_region
          %s87 = sand.u32 %s23, 1
          %s88 = scalar_lea.sflag [#allocation3], %s87
          %s89 = sand.u32 %s23, 1
          %s90 = smul.addr %s89, 64
          %s91 = scalar_lea.vmem [#allocation2], %s90
          %s92 = smul.u32 4, %s13
          %s94 = ssub.s32 1024, 1024
          %95 = vsyncadd %s88, %s94
          %s96 = smul.addr %s92, 2
          %s97 = smul.addr %s96, 128
          %s98 = scalar_lea.hbm %s0, %s97
          %s99 = sshll.u32 %s91, 4
          %s100 = int_to_ptr.vmem [resolvable:$true] %s99
          %105 = dma.hbm_to_vmem [thread:$0]  %s98, 1024, %s100, %s88, 128, 128, 8
        $region20: #{tpu_custom_call.1} parent=15 // pred_fallthru
          _
      $region16: #{tpu_custom_call.1} parent=5 // pred_fallthru
        _
      %p106 = scmp.le.s32.totalorder 1, %s13
      %p107 = scmp.lt.s32.totalorder %s13, 3
      %p108 = pnand %p106, %p107
      %p109 = pneg %p108
      // Predicated region
      $region21: #{tpu_custom_call.1} parent=5 // pred_check
        _
      $region22: #{tpu_custom_call.1} parent=5 // pred_check_branch
        %111 = sbr.rel (%p108) target = $region24
      $region23: #{tpu_custom_call.1} parent=5 // pred_region
        %s112 = ssub.s32 %s13, 1
        %s113 = sand.u32 %s26, 1
        %s114 = scalar_lea.sflag [#allocation3], %s113
        %s115 = sand.u32 %s26, 1
        %s116 = smul.addr %s115, 64
        %s117 = scalar_lea.vmem [#allocation2], %s116
        // Predicated region
        $region25: #{tpu_custom_call.1} parent=23 // pred_check
          %p118 = pneg %p39
        $region26: #{tpu_custom_call.1} parent=23 // pred_check_branch
          %120 = sbr.rel (%p118) target = $region28
        $region27: #{tpu_custom_call.1} parent=23 // pred_region
          %121 = dma.done %s114, 1024
        $region28: #{tpu_custom_call.1} parent=23 // pred_fallthru
          _
        %s122 = sand.u32 %s26, 1
        %s123 = scalar_lea.sflag [#allocation3], %s122
        %s124 = sand.u32 %s26, 1
        %s125 = smul.addr %s124, 64
        %s126 = scalar_lea.vmem [#allocation2], %s125
        %p127 = pneg %p39
        %p128 = pneg %p36
        %p129 = pneg %p65
        %p130 = pneg %p62
        %s131 = sand.u32 %s52, 1
        %s132 = scalar_lea.sflag [#allocation4], %s131
        %s133 = sand.u32 %s52, 1
        %s134 = smul.addr %s133, 64
        %s135 = scalar_lea.vmem [#allocation5], %s134
        %s136 = smul.u32 4, %s18
        %s137 = smul.u32 4, %s18
        %v138 = vld [vmem:[%s117] sm:$0xff]
        %v139 = vld [vmem:[%s117 + $0x8] sm:$0xff]
        %v140 = vld [vmem:[%s117 + $0x10] sm:$0xff]
        %v141 = vld [vmem:[%s117 + $0x18] sm:$0xff]
        %v142 = vld [vmem:[%s117 + $0x20] sm:$0xff]
        %v143 = vld [vmem:[%s117 + $0x28] sm:$0xff]
        %v144 = vld [vmem:[%s117 + $0x30] sm:$0xff]
        %v145 = vld [vmem:[%s117 + $0x38] sm:$0xff]
        %v146 = vlaneseq
        %v147 = vshrl.u32 %v146, 7
        %v148 = vadd.s32 %v147, 8
        %v149 = vlaneseq
        %v150 = vand.u32 %v149, 127
        %vm151 = vcmp.ge.s32.totalorder %v147, 1
        %vm152 = vcmp.ge.s32.totalorder %v148, 1
        %v153 = vrot.slane %v138, 7
        %v154 = vrot.slane %v140, 7
        %v155 = vrot.slane %v142, 7
        %v156 = vrot.slane %v144, 7
        %v157 = vrot.slane %v139, 7
        %v158 = vrot.slane %v141, 7
        %v159 = vrot.slane %v143, 7
        %v160 = vrot.slane %v145, 7
        %vm161 = vcmp.lt.s32.totalorder %v147, 1
        %v162 = vsel %vm161, %v153, %v157
        %v163 = vsel %vm161, %v154, %v158
        %v164 = vsel %vm161, %v155, %v159
        %v165 = vsel %vm161, %v156, %v160
        %v166 = vsel %vm161, %v157, %v153
        %v167 = vsel %vm161, %v158, %v154
        %v168 = vsel %vm161, %v159, %v155
        %v169 = vsel %vm161, %v160, %v156
        %v170 = vsel %vm151, 1, 0
        %v171 = vsel %vm152, 1, 0
        %vm172 = vcmp.eq.s32.totalorder %v170, 1
        %vm173 = vcmp.eq.s32.totalorder %v171, 1
        %v174 = vsel %vm172, %v166, 0.0
        %v175 = vsel %vm173, %v162, 0.0
        %v176 = vsel %vm172, %v167, 0.0
        %v177 = vsel %vm173, %v163, 0.0
        %v178 = vsel %vm172, %v168, 0.0
        %v179 = vsel %vm173, %v164, 0.0
        %v180 = vsel %vm172, %v169, 0.0
        %v181 = vsel %vm173, %v165, 0.0
        %v182 = vadd.f32 %v138, %v174
        %v183 = vadd.f32 %v139, %v175
        %v184 = vadd.f32 %v140, %v176
        %v185 = vadd.f32 %v141, %v177
        %v186 = vadd.f32 %v142, %v178
        %v187 = vadd.f32 %v143, %v179
        %v188 = vadd.f32 %v144, %v180
        %v189 = vadd.f32 %v145, %v181
        %vm190 = vcmp.lt.s32.totalorder %v147, 15
        %vm191 = vcmp.lt.s32.totalorder %v148, 15
        %v192 = vrot.slane %v138, 1
        %v193 = vrot.slane %v140, 1
        %v194 = vrot.slane %v142, 1
        %v195 = vrot.slane %v144, 1
        %v196 = vrot.slane %v139, 1
        %v197 = vrot.slane %v141, 1
        %v198 = vrot.slane %v143, 1
        %v199 = vrot.slane %v145, 1
        %vm200 = vcmp.lt.s32.totalorder %v147, 7
        %v201 = vsel %vm200, %v192, %v196
        %v202 = vsel %vm200, %v193, %v197
        %v203 = vsel %vm200, %v194, %v198
        %v204 = vsel %vm200, %v195, %v199
        %v205 = vsel %vm200, %v196, %v192
        %v206 = vsel %vm200, %v197, %v193
        %v207 = vsel %vm200, %v198, %v194
        %v208 = vsel %vm200, %v199, %v195
        %v209 = vsel %vm190, 1, 0
        %v210 = vsel %vm191, 1, 0
        %vm211 = vcmp.eq.s32.totalorder %v209, 1
        %vm212 = vcmp.eq.s32.totalorder %v210, 1
        %v213 = vsel %vm211, %v201, 0.0
        %v214 = vsel %vm212, %v205, 0.0
        %v215 = vsel %vm211, %v202, 0.0
        %v216 = vsel %vm212, %v206, 0.0
        %v217 = vsel %vm211, %v203, 0.0
        %v218 = vsel %vm212, %v207, 0.0
        %v219 = vsel %vm211, %v204, 0.0
        %v220 = vsel %vm212, %v208, 0.0
        %v221 = vadd.f32 %v182, %v213
        %v222 = vadd.f32 %v183, %v214
        %v223 = vadd.f32 %v184, %v215
        %v224 = vadd.f32 %v185, %v216
        %v225 = vadd.f32 %v186, %v217
        %v226 = vadd.f32 %v187, %v218
        %v227 = vadd.f32 %v188, %v219
        %v228 = vadd.f32 %v189, %v220
        %vm229 = vcmp.ge.s32.totalorder %v150, 1
        %vm230 = vcmask 1047680
        %231 = vrot.lane.b32.xlu0 %v221, 16
        %v232 = vpop.permute.xlu0 %231
        %v233 = vsel %vm230, %v232, %v221
        %234 = vrot.lane.b32.xlu0 %v222, 16
        %v235 = vpop.permute.xlu0 %234
        %v236 = vsel %vm230, %v235, %v222
        %237 = vrot.lane.b32.xlu0 %v223, 16
        %v238 = vpop.permute.xlu0 %237
        %v239 = vsel %vm230, %v238, %v223
        %240 = vrot.lane.b32.xlu0 %v224, 16
        %v241 = vpop.permute.xlu0 %240
        %v242 = vsel %vm230, %v241, %v224
        %243 = vrot.lane.b32.xlu0 %v225, 16
        %v244 = vpop.permute.xlu0 %243
        %v245 = vsel %vm230, %v244, %v225
        %246 = vrot.lane.b32.xlu0 %v226, 16
        %v247 = vpop.permute.xlu0 %246
        %v248 = vsel %vm230, %v247, %v226
        %249 = vrot.lane.b32.xlu0 %v227, 16
        %v250 = vpop.permute.xlu0 %249
        %v251 = vsel %vm230, %v250, %v227
        %252 = vrot.lane.b32.xlu0 %v228, 16
        %v253 = vpop.permute.xlu0 %252
        %v254 = vsel %vm230, %v253, %v228
        %255 = vrot.lane.b32.xlu0 %v233, 16
        %v256 = vpop.permute.xlu0 %255
        %257 = vrot.lane.b32.xlu0 %v236, 16
        %v258 = vpop.permute.xlu0 %257
        %259 = vrot.lane.b32.xlu0 %v239, 16
        %v260 = vpop.permute.xlu0 %259
        %261 = vrot.lane.b32.xlu0 %v242, 16
        %v262 = vpop.permute.xlu0 %261
        %263 = vrot.lane.b32.xlu0 %v245, 16
        %v264 = vpop.permute.xlu0 %263
        %265 = vrot.lane.b32.xlu0 %v248, 16
        %v266 = vpop.permute.xlu0 %265
        %267 = vrot.lane.b32.xlu0 %v251, 16
        %v268 = vpop.permute.xlu0 %267
        %269 = vrot.lane.b32.xlu0 %v254, 16
        %v270 = vpop.permute.xlu0 %269
        %v271 = vsel %vm230, %v256, %v221
        %v272 = vsel %vm230, %v258, %v222
        %v273 = vsel %vm230, %v260, %v223
        %v274 = vsel %vm230, %v262, %v224
        %v275 = vsel %vm230, %v264, %v225
        %v276 = vsel %vm230, %v266, %v226
        %v277 = vsel %vm230, %v268, %v227
        %v278 = vsel %vm230, %v270, %v228
        %v279 = vsel %vm229, 1, 0
        %vm280 = vcmp.eq.s32.totalorder %v279, 1
        %289 = vrot.lane.b32.xlu0 %v271, 113
        %v290 = vpop.permute.xlu0 %289
        %291 = vrot.lane.b32.xlu0 %v272, 113
        %v292 = vpop.permute.xlu0 %291
        %293 = vrot.lane.b32.xlu0 %v273, 113
        %v294 = vpop.permute.xlu0 %293
        %295 = vrot.lane.b32.xlu0 %v274, 113
        %v296 = vpop.permute.xlu0 %295
        %297 = vrot.lane.b32.xlu0 %v275, 113
        %v298 = vpop.permute.xlu0 %297
        %299 = vrot.lane.b32.xlu0 %v276, 113
        %v300 = vpop.permute.xlu0 %299
        %301 = vrot.lane.b32.xlu0 %v277, 113
        %v302 = vpop.permute.xlu0 %301
        %303 = vrot.lane.b32.xlu0 %v278, 113
        %v304 = vpop.permute.xlu0 %303
        %v313 = vsel %vm280, %v290, 0.0
        %v314 = vsel %vm280, %v292, 0.0
        %v315 = vsel %vm280, %v294, 0.0
        %v316 = vsel %vm280, %v296, 0.0
        %v317 = vsel %vm280, %v298, 0.0
        %v318 = vsel %vm280, %v300, 0.0
        %v319 = vsel %vm280, %v302, 0.0
        %v320 = vsel %vm280, %v304, 0.0
        %v321 = vadd.f32 %v221, %v313
        %v322 = vadd.f32 %v222, %v314
        %v323 = vadd.f32 %v223, %v315
        %v324 = vadd.f32 %v224, %v316
        %v325 = vadd.f32 %v225, %v317
        %v326 = vadd.f32 %v226, %v318
        %v327 = vadd.f32 %v227, %v319
        %v328 = vadd.f32 %v228, %v320
        %vm329 = vcmp.lt.s32.totalorder %v150, 15
        %v330 = vsel %vm329, 1, 0
        %vm331 = vcmp.eq.s32.totalorder %v330, 1
        %332 = vrot.lane.b32.xlu0 %v271, 127
        %v333 = vpop.permute.xlu0 %332
        %334 = vrot.lane.b32.xlu0 %v272, 127
        %v335 = vpop.permute.xlu0 %334
        %336 = vrot.lane.b32.xlu0 %v273, 127
        %v337 = vpop.permute.xlu0 %336
        %338 = vrot.lane.b32.xlu0 %v274, 127
        %v339 = vpop.permute.xlu0 %338
        %340 = vrot.lane.b32.xlu0 %v275, 127
        %v341 = vpop.permute.xlu0 %340
        %342 = vrot.lane.b32.xlu0 %v276, 127
        %v343 = vpop.permute.xlu0 %342
        %344 = vrot.lane.b32.xlu0 %v277, 127
        %v345 = vpop.permute.xlu0 %344
        %346 = vrot.lane.b32.xlu0 %v278, 127
        %v347 = vpop.permute.xlu0 %346
        %v356 = vsel %vm331, %v333, 0.0
        %v357 = vsel %vm331, %v335, 0.0
        %v358 = vsel %vm331, %v337, 0.0
        %v359 = vsel %vm331, %v339, 0.0
        %v360 = vsel %vm331, %v341, 0.0
        %v361 = vsel %vm331, %v343, 0.0
        %v362 = vsel %vm331, %v345, 0.0
        %v363 = vsel %vm331, %v347, 0.0
        %v364 = vadd.f32 %v321, %v356
        %v365 = vadd.f32 %v322, %v357
        %v366 = vadd.f32 %v323, %v358
        %v367 = vadd.f32 %v324, %v359
        %v368 = vadd.f32 %v325, %v360
        %v369 = vadd.f32 %v326, %v361
        %v370 = vadd.f32 %v327, %v362
        %v371 = vadd.f32 %v328, %v363
        %v372 = vadd.s32 %v147, 1
        %v373 = vadd.s32 %v148, 1
        %vm374 = vcmp.lt.s32.totalorder %v372, 15
        %v375 = vsel %vm374, %v372, 15
        %vm376 = vcmp.lt.s32.totalorder %v373, 15
        %v377 = vsel %vm376, %v373, 15
        %v378 = vsub.s32 %v147, 1
        %v379 = vsub.s32 %v148, 1
        %vm380 = vcmp.gt.s32.totalorder %v378, 0
        %v381 = vsel %vm380, %v378, 0
        %vm382 = vcmp.gt.s32.totalorder %v379, 0
        %v383 = vsel %vm382, %v379, 0
        %v384 = vsub.s32 %v375, %v381
        %v385 = vsub.s32 %v377, %v383
        %v386 = vadd.s32 %v384, 1
        %v387 = vadd.s32 %v385, 1
        %v388 = vadd.s32 %v150, 1
        %vm389 = vcmp.lt.s32.totalorder %v388, 15
        %v390 = vsel %vm389, %v388, 15
        %v391 = vsub.s32 %v150, 1
        %vm392 = vcmp.gt.s32.totalorder %v391, 0
        %v393 = vsel %vm392, %v391, 0
        %v394 = vsub.s32 %v390, %v393
        %v395 = vadd.s32 %v394, 1
        %v396 = vmul.u32 %v386, %v395
        %v397 = vmul.u32 %v387, %v395
        %v398 = vcvt.s32.f32 %v396
        %v399 = vcvt.s32.f32 %v397
        %v400 = vrcp.pop %v398
        %v401 = vmul.f32 1.0, %v400
        %v402 = vrcp.pop %v399
        %v403 = vmul.f32 1.0, %v402
        %v404 = vmul.f32 %v364, %v401
        %v405 = vmul.f32 %v365, %v403
        %v406 = vmul.f32 %v366, %v401
        %v407 = vmul.f32 %v367, %v403
        %v408 = vmul.f32 %v368, %v401
        %v409 = vmul.f32 %v369, %v403
        %v410 = vmul.f32 %v370, %v401
        %v411 = vmul.f32 %v371, %v403
        %v412 = vsub.f32 %v404, %v138
        %v413 = vsub.f32 %v405, %v139
        %v414 = vsub.f32 %v406, %v140
        %v415 = vsub.f32 %v407, %v141
        %v416 = vsub.f32 %v408, %v142
        %v417 = vsub.f32 %v409, %v143
        %v418 = vsub.f32 %v410, %v144
        %v419 = vsub.f32 %v411, %v145
        %vm420 = vcmask 130048
        %421 = vst.msk [vmem:[%s135] sm:$0xff] %vm420, %v412
        %422 = vst.msk [vmem:[%s135 + $0x8] sm:$0xff] %vm420, %v413
        %423 = vst.msk [vmem:[%s135 + $0x10] sm:$0xff] %vm420, %v414
        %424 = vst.msk [vmem:[%s135 + $0x18] sm:$0xff] %vm420, %v415
        %425 = vst.msk [vmem:[%s135 + $0x20] sm:$0xff] %vm420, %v416
        %426 = vst.msk [vmem:[%s135 + $0x28] sm:$0xff] %vm420, %v417
        %427 = vst.msk [vmem:[%s135 + $0x30] sm:$0xff] %vm420, %v418
        %428 = vst.msk [vmem:[%s135 + $0x38] sm:$0xff] %vm420, %v419
        %s429 = sand.u32 %s52, 1
        %s430 = scalar_lea.sflag [#allocation4], %s429
        %s431 = sand.u32 %s52, 1
        %s432 = smul.addr %s431, 64
        %s433 = scalar_lea.vmem [#allocation5], %s432
        // Predicated region
        $region29: #{tpu_custom_call.1} parent=23 // pred_check
          %p434 = pneg %p62
        $region30: #{tpu_custom_call.1} parent=23 // pred_check_branch
          %436 = sbr.rel (%p434) target = $region32
        $region31: #{tpu_custom_call.1} parent=23 // pred_region
          %s437 = smul.u32 4, %s18
          %s439 = ssub.s32 1024, 1024
          %440 = vsyncadd %s430, %s439
          %s441 = smul.addr %s437, 2
          %s442 = smul.addr %s441, 128
          %s443 = scalar_lea.hbm %s1, %s442
          %s444 = sshll.u32 %s433, 4
          %s445 = int_to_ptr.vmem [resolvable:$true] %s444
          %450 = dma.vmem_to_hbm [thread:$0]  %s445, 1024, %s443, %s430, 128, 128, 8
        $region32: #{tpu_custom_call.1} parent=23 // pred_fallthru
          _
      $region24: #{tpu_custom_call.1} parent=5 // pred_fallthru
        _
      %p451 = scmp.le.s32.totalorder 2, %s13
      // Predicated region
      $region33: #{tpu_custom_call.1} parent=5 // pred_check
        %p452 = pneg %p451
      $region34: #{tpu_custom_call.1} parent=5 // pred_check_branch
        %454 = sbr.rel (%p452) target = $region36
      $region35: #{tpu_custom_call.1} parent=5 // pred_region
        %s455 = ssub.s32 %s13, 2
        // Predicated region
        $region37: #{tpu_custom_call.1} parent=35 // pred_check
          %p456 = pneg %p68
        $region38: #{tpu_custom_call.1} parent=35 // pred_check_branch
          %458 = sbr.rel (%p456) target = $region40
        $region39: #{tpu_custom_call.1} parent=35 // pred_region
          %s459 = sand.u32 %s53, 1
          %s460 = scalar_lea.sflag [#allocation4], %s459
          %s461 = sand.u32 %s53, 1
          %s462 = smul.addr %s461, 64
          %s463 = scalar_lea.vmem [#allocation5], %s462
          %464 = dma.done %s460, 1024
        $region40: #{tpu_custom_call.1} parent=35 // pred_fallthru
          _
      $region36: #{tpu_custom_call.1} parent=5 // pred_fallthru
        _
    $region6: #{tpu_custom_call.1} parent=1 // loop_footer
      %s17 = sadd.s32 1, %s13
    $region7: #{tpu_custom_call.1} parent=1 // loop_footer_branch
      %12 = sbr.rel target = $region3
    $region8: #{tpu_custom_call.1} parent=1 // loop_exit
      _
    %465 = vsyncpa [#allocation3], 1
    %s466 = scalar_lea.sflag [#allocation3], 1
    %467 = vsyncpa %s466, 1
    %468 = vsyncpa [#allocation4], 1
    %s469 = scalar_lea.sflag [#allocation4], 1
    %470 = vsyncpa %s469, 1

</llo_original>
